<compile_context>
chip_gen: v7x
topology: tpu7x:2x2x1
jax: 0.10.0
libtpu: 0.0.40
codegen_flags: <defaults>
</compile_context>

<pallas_src>
import functools
import math

import jax
import jax.numpy as jnp
from jax import lax
from jax.experimental import pallas as pl
from jax.experimental.pallas import tpu as pltpu


# --------------------------------------------------------------------------- kernel

def _dwconv3x3_kernel(x_ref, w_ref, b_ref, o_ref):
    """Depthwise 3x3, stride 1.

    x_ref: (1, H+2, W, TC)  -- H zero-padded by 1 row top & bottom, W unpadded
    w_ref: (9, TC)          -- tap-major (kh*3 + kw), channel-last
    b_ref: (1, TC)
    o_ref: (1, H, W, TC)
    """
    hp, wlen, tc = x_ref.shape[1], x_ref.shape[2], x_ref.shape[3]
    h = hp - 2

    x = x_ref[0].astype(jnp.float32)            # (H+2, W, TC)
    wt = w_ref[...].astype(jnp.float32)         # (9, TC)
    bias = b_ref[0].astype(jnp.float32)         # (TC,)

    # W-direction neighbours via XLU sublane rotation + single-column boundary mask.
    #   roll(x, 1)      -> out[w] = x[w-1]   (column 0 wrapped -> zero it)
    #   roll(x, W-1)    -> out[w] = x[w+1]   (column W-1 wrapped -> zero it)
    col = lax.broadcasted_iota(jnp.int32, (hp, wlen, tc), 1)
    x_wm1 = pltpu.roll(x, 1, axis=1)
    x_wm1 = jnp.where(col == 0, 0.0, x_wm1)
    x_wp1 = pltpu.roll(x, wlen - 1, axis=1)
    x_wp1 = jnp.where(col == wlen - 1, 0.0, x_wp1)

    acc = jnp.zeros((h, wlen, tc), jnp.float32)
    for kh in range(3):                         # H shifts = free leading-axis slices
        acc = acc + x_wm1[kh:kh + h] * wt[3 * kh + 0]
        acc = acc + x[kh:kh + h] * wt[3 * kh + 1]
        acc = acc + x_wp1[kh:kh + h] * wt[3 * kh + 2]
    acc = acc + bias                            # bias broadcast once, not per tap

    o_ref[...] = acc[None].astype(o_ref.dtype)


# --------------------------------------------------------------------------- wrapper

def _pick_channel_tile(c):
    # Lane-dense 128-wide channel tiles when possible (bounds VMEM, feeds both TCs);
    # otherwise use the full channel dim (block dim == array dim is always legal).
    return 128 if (c % 128 == 0) else c


def dwconv3x3_nhwc(x_nhwc, w9c, bias):
    b, h, w, c = x_nhwc.shape
    tc = _pick_channel_tile(c)
    xp = jnp.pad(x_nhwc, ((0, 0), (1, 1), (0, 0), (0, 0)))   # pad H only; W handled in-kernel

    # Scoped-VMEM budget sized to the actual block footprint (+ in-kernel f32 temporaries),
    # floored at 32 MiB so we never under-provision vs. the platform default.
    itemsize = jnp.dtype(x_nhwc.dtype).itemsize
    in_block = (h + 2) * w * tc * itemsize
    out_block = h * w * tc * itemsize
    temps = 5 * (h + 2) * w * tc * 4                          # x, 2 rolls, mask, acc (f32)
    vmem_limit = int(1.5 * (2 * (in_block + out_block) + temps)) + (1 << 20)
    vmem_limit = max(min(vmem_limit, 128 * 1024 * 1024), 32 * 1024 * 1024)

    return pl.pallas_call(
        _dwconv3x3_kernel,
        out_shape=jax.ShapeDtypeStruct((b, h, w, c), x_nhwc.dtype),
        grid=(b, c // tc),
        in_specs=[
            pl.BlockSpec((1, h + 2, w, tc), lambda i, j: (i, 0, 0, j)),
            pl.BlockSpec((9, tc), lambda i, j: (0, j)),
            pl.BlockSpec((1, tc), lambda i, j: (0, j)),
        ],
        out_specs=pl.BlockSpec((1, h, w, tc), lambda i, j: (i, 0, 0, j)),
        compiler_params=pltpu.CompilerParams(
            dimension_semantics=("parallel", "parallel"),
            vmem_limit_bytes=vmem_limit,
        ),
    )(xp, w9c, bias.reshape(1, c))


def depthwise_conv_forward(x_bnc, w9c, bias, H, W):
    """DepthwiseConv.forward: x (B, H*W, C) -> (B, H*W, C)."""
    b, n, c = x_bnc.shape
    assert n == H * W, (n, H, W)
    y = dwconv3x3_nhwc(x_bnc.reshape(b, H, W, c), w9c, bias)
    return y.reshape(b, n, c)


# --------------------------------------------------------------------------- reference (pure JAX)

def _reference(x_bnc, w9c, bias, H, W):
    b, n, c = x_bnc.shape
    x = x_bnc.reshape(b, H, W, c)
    rhs = w9c.reshape(3, 3, 1, c)                            # HWIO, depthwise
    y = lax.conv_general_dilated(
        x, rhs, window_strides=(1, 1), padding="SAME",
        dimension_numbers=("NHWC", "HWIO", "NHWC"),
        feature_group_count=c)
    return (y + bias).reshape(b, n, c)


# --------------------------------------------------------------------------- test

if __name__ == "__main__":
    B, DIM, H, W = 2, 32, 16, 16
    kx, kw, kb = jax.random.split(jax.random.PRNGKey(0), 3)
    x = jax.random.normal(kx, (B, H * W, DIM), jnp.float32)
    # Conv2d init from _init_weights: normal(0, sqrt(2/fan_out)), fan_out = 3*3*dim/groups = 9.
    w9c = math.sqrt(2.0 / 9.0) * jax.random.normal(kw, (9, DIM), jnp.float32)
    bias = 0.1 * jax.random.normal(kb, (DIM,), jnp.float32)  # nonzero to exercise the bias path

    fwd = jax.jit(functools.partial(depthwise_conv_forward, H=H, W=W))
    out = jax.block_until_ready(fwd(x, w9c, bias))
    assert out.shape == (B, H * W, DIM), out.shape
    assert bool(jnp.all(jnp.isfinite(out)))

    ref = jax.block_until_ready(
        jax.jit(functools.partial(_reference, H=H, W=W))(x, w9c, bias))
    err = float(jnp.max(jnp.abs(out - ref)))
    assert err < 1e-4, f"max abs err vs reference: {err}"

    print("KERNEL_OK")
</pallas_src>

<mosaic_0001>
module attributes {stable_mosaic.version = 11 : i64} {
  func.func @_dwconv3x3_kernel(%arg0: i32, %arg1: i32, %arg2: memref<1x18x16x32xf32, #tpu.memory_space<vmem>>, %arg3: memref<9x32xf32, #tpu.memory_space<vmem>>, %arg4: memref<1x32xf32, #tpu.memory_space<vmem>>, %arg5: memref<1x16x16x32xf32, #tpu.memory_space<vmem>>) attributes {dimension_semantics = [#tpu.dimension_semantics<parallel>, #tpu.dimension_semantics<parallel>], iteration_bounds = array<i64: 2, 1>, scalar_prefetch = 0 : i64, scratch_operands = 0 : i64, tpu.core_type = #tpu.core_type<tc>, window_params = [{transform_indices = @transform_0, window_bounds = array<i64: 1, 18, 16, 32>}, {transform_indices = @transform_1, window_bounds = array<i64: 9, 32>}, {transform_indices = @transform_2, window_bounds = array<i64: 1, 32>}, {transform_indices = @transform_3, window_bounds = array<i64: 1, 16, 16, 32>}]} {
    %c0 = arith.constant 0 : index
    %c0_0 = arith.constant 0 : index
    %c0_1 = arith.constant 0 : index
    %c0_2 = arith.constant 0 : index
    %0 = vector.load %arg2[%c0, %c0_0, %c0_1, %c0_2] : memref<1x18x16x32xf32, #tpu.memory_space<vmem>>, vector<1x18x16x32xf32>
    %1 = vector.shape_cast %0 : vector<1x18x16x32xf32> to vector<18x16x32xf32>
    %c0_3 = arith.constant 0 : index
    %c0_4 = arith.constant 0 : index
    %2 = vector.load %arg3[%c0_3, %c0_4] : memref<9x32xf32, #tpu.memory_space<vmem>>, vector<9x32xf32>
    %c0_5 = arith.constant 0 : index
    %c0_6 = arith.constant 0 : index
    %3 = vector.load %arg4[%c0_5, %c0_6] : memref<1x32xf32, #tpu.memory_space<vmem>>, vector<1x32xf32>
    %4 = vector.shape_cast %3 : vector<1x32xf32> to vector<32xf32>
    %5 = tpu.iota {dimensions = array<i32: 1>} : vector<18x16x32xi32>
    %c1_i32 = arith.constant 1 : i32
    %6 = tpu.dynamic_rotate %1 by %c1_i32 dim 1 : vector<18x16x32xf32>, i32 -> vector<18x16x32xf32>
    %c0_i32 = arith.constant 0 : i32
    %7 = vector.broadcast %c0_i32 : i32 to vector<18x16x32xi32>
    %8 = arith.cmpi eq, %5, %7 : vector<18x16x32xi32>
    %cst = arith.constant 0.000000e+00 : f32
    %9 = vector.broadcast %cst : f32 to vector<18x16x32xf32>
    %10 = arith.select %8, %9, %6 : vector<18x16x32xi1>, vector<18x16x32xf32>
    %c15_i32 = arith.constant 15 : i32
    %11 = tpu.dynamic_rotate %1 by %c15_i32 dim 1 : vector<18x16x32xf32>, i32 -> vector<18x16x32xf32>
    %c15_i32_7 = arith.constant 15 : i32
    %12 = vector.broadcast %c15_i32_7 : i32 to vector<18x16x32xi32>
    %13 = arith.cmpi eq, %5, %12 : vector<18x16x32xi32>
    %cst_8 = arith.constant 0.000000e+00 : f32
    %14 = vector.broadcast %cst_8 : f32 to vector<18x16x32xf32>
    %15 = arith.select %13, %14, %11 : vector<18x16x32xi1>, vector<18x16x32xf32>
    %cst_9 = arith.constant 0.000000e+00 : f32
    %16 = vector.broadcast %cst_9 : f32 to vector<16x16x32xf32>
    %17 = vector.extract_strided_slice %10 {offsets = [0, 0, 0], sizes = [16, 16, 32], strides = [1, 1, 1]} : vector<18x16x32xf32> to vector<16x16x32xf32>
    %18 = vector.extract_strided_slice %2 {offsets = [0, 0], sizes = [1, 32], strides = [1, 1]} : vector<9x32xf32> to vector<1x32xf32>
    %19 = vector.shape_cast %18 : vector<1x32xf32> to vector<32xf32>
    %20 = vector.shape_cast %19 : vector<32xf32> to vector<1x1x32xf32>
    %21 = vector.broadcast %20 : vector<1x1x32xf32> to vector<16x16x32xf32>
    %22 = arith.mulf %17, %21 : vector<16x16x32xf32>
    %23 = arith.addf %16, %22 : vector<16x16x32xf32>
    %24 = vector.extract_strided_slice %1 {offsets = [0, 0, 0], sizes = [16, 16, 32], strides = [1, 1, 1]} : vector<18x16x32xf32> to vector<16x16x32xf32>
    %25 = vector.extract_strided_slice %2 {offsets = [1, 0], sizes = [1, 32], strides = [1, 1]} : vector<9x32xf32> to vector<1x32xf32>
    %26 = vector.shape_cast %25 : vector<1x32xf32> to vector<32xf32>
    %27 = vector.shape_cast %26 : vector<32xf32> to vector<1x1x32xf32>
    %28 = vector.broadcast %27 : vector<1x1x32xf32> to vector<16x16x32xf32>
    %29 = arith.mulf %24, %28 : vector<16x16x32xf32>
    %30 = arith.addf %23, %29 : vector<16x16x32xf32>
    %31 = vector.extract_strided_slice %15 {offsets = [0, 0, 0], sizes = [16, 16, 32], strides = [1, 1, 1]} : vector<18x16x32xf32> to vector<16x16x32xf32>
    %32 = vector.extract_strided_slice %2 {offsets = [2, 0], sizes = [1, 32], strides = [1, 1]} : vector<9x32xf32> to vector<1x32xf32>
    %33 = vector.shape_cast %32 : vector<1x32xf32> to vector<32xf32>
    %34 = vector.shape_cast %33 : vector<32xf32> to vector<1x1x32xf32>
    %35 = vector.broadcast %34 : vector<1x1x32xf32> to vector<16x16x32xf32>
    %36 = arith.mulf %31, %35 : vector<16x16x32xf32>
    %37 = arith.addf %30, %36 : vector<16x16x32xf32>
    %38 = vector.extract_strided_slice %10 {offsets = [1, 0, 0], sizes = [16, 16, 32], strides = [1, 1, 1]} : vector<18x16x32xf32> to vector<16x16x32xf32>
    %39 = vector.extract_strided_slice %2 {offsets = [3, 0], sizes = [1, 32], strides = [1, 1]} : vector<9x32xf32> to vector<1x32xf32>
    %40 = vector.shape_cast %39 : vector<1x32xf32> to vector<32xf32>
    %41 = vector.shape_cast %40 : vector<32xf32> to vector<1x1x32xf32>
    %42 = vector.broadcast %41 : vector<1x1x32xf32> to vector<16x16x32xf32>
    %43 = arith.mulf %38, %42 : vector<16x16x32xf32>
    %44 = arith.addf %37, %43 : vector<16x16x32xf32>
    %45 = vector.extract_strided_slice %1 {offsets = [1, 0, 0], sizes = [16, 16, 32], strides = [1, 1, 1]} : vector<18x16x32xf32> to vector<16x16x32xf32>
    %46 = vector.extract_strided_slice %2 {offsets = [4, 0], sizes = [1, 32], strides = [1, 1]} : vector<9x32xf32> to vector<1x32xf32>
    %47 = vector.shape_cast %46 : vector<1x32xf32> to vector<32xf32>
    %48 = vector.shape_cast %47 : vector<32xf32> to vector<1x1x32xf32>
    %49 = vector.broadcast %48 : vector<1x1x32xf32> to vector<16x16x32xf32>
    %50 = arith.mulf %45, %49 : vector<16x16x32xf32>
    %51 = arith.addf %44, %50 : vector<16x16x32xf32>
    %52 = vector.extract_strided_slice %15 {offsets = [1, 0, 0], sizes = [16, 16, 32], strides = [1, 1, 1]} : vector<18x16x32xf32> to vector<16x16x32xf32>
    %53 = vector.extract_strided_slice %2 {offsets = [5, 0], sizes = [1, 32], strides = [1, 1]} : vector<9x32xf32> to vector<1x32xf32>
    %54 = vector.shape_cast %53 : vector<1x32xf32> to vector<32xf32>
    %55 = vector.shape_cast %54 : vector<32xf32> to vector<1x1x32xf32>
    %56 = vector.broadcast %55 : vector<1x1x32xf32> to vector<16x16x32xf32>
    %57 = arith.mulf %52, %56 : vector<16x16x32xf32>
    %58 = arith.addf %51, %57 : vector<16x16x32xf32>
    %59 = vector.extract_strided_slice %10 {offsets = [2, 0, 0], sizes = [16, 16, 32], strides = [1, 1, 1]} : vector<18x16x32xf32> to vector<16x16x32xf32>
    %60 = vector.extract_strided_slice %2 {offsets = [6, 0], sizes = [1, 32], strides = [1, 1]} : vector<9x32xf32> to vector<1x32xf32>
    %61 = vector.shape_cast %60 : vector<1x32xf32> to vector<32xf32>
    %62 = vector.shape_cast %61 : vector<32xf32> to vector<1x1x32xf32>
    %63 = vector.broadcast %62 : vector<1x1x32xf32> to vector<16x16x32xf32>
    %64 = arith.mulf %59, %63 : vector<16x16x32xf32>
    %65 = arith.addf %58, %64 : vector<16x16x32xf32>
    %66 = vector.extract_strided_slice %1 {offsets = [2, 0, 0], sizes = [16, 16, 32], strides = [1, 1, 1]} : vector<18x16x32xf32> to vector<16x16x32xf32>
    %67 = vector.extract_strided_slice %2 {offsets = [7, 0], sizes = [1, 32], strides = [1, 1]} : vector<9x32xf32> to vector<1x32xf32>
    %68 = vector.shape_cast %67 : vector<1x32xf32> to vector<32xf32>
    %69 = vector.shape_cast %68 : vector<32xf32> to vector<1x1x32xf32>
    %70 = vector.broadcast %69 : vector<1x1x32xf32> to vector<16x16x32xf32>
    %71 = arith.mulf %66, %70 : vector<16x16x32xf32>
    %72 = arith.addf %65, %71 : vector<16x16x32xf32>
    %73 = vector.extract_strided_slice %15 {offsets = [2, 0, 0], sizes = [16, 16, 32], strides = [1, 1, 1]} : vector<18x16x32xf32> to vector<16x16x32xf32>
    %74 = vector.extract_strided_slice %2 {offsets = [8, 0], sizes = [1, 32], strides = [1, 1]} : vector<9x32xf32> to vector<1x32xf32>
    %75 = vector.shape_cast %74 : vector<1x32xf32> to vector<32xf32>
    %76 = vector.shape_cast %75 : vector<32xf32> to vector<1x1x32xf32>
    %77 = vector.broadcast %76 : vector<1x1x32xf32> to vector<16x16x32xf32>
    %78 = arith.mulf %73, %77 : vector<16x16x32xf32>
    %79 = arith.addf %72, %78 : vector<16x16x32xf32>
    %80 = vector.shape_cast %4 : vector<32xf32> to vector<1x1x32xf32>
    %81 = vector.broadcast %80 : vector<1x1x32xf32> to vector<16x16x32xf32>
    %82 = arith.addf %79, %81 : vector<16x16x32xf32>
    %83 = vector.shape_cast %82 : vector<16x16x32xf32> to vector<1x16x16x32xf32>
    %c0_10 = arith.constant 0 : index
    %c0_11 = arith.constant 0 : index
    %c0_12 = arith.constant 0 : index
    %c0_13 = arith.constant 0 : index
    %84 = vector.load %arg5[%c0_10, %c0_11, %c0_12, %c0_13] : memref<1x16x16x32xf32, #tpu.memory_space<vmem>>, vector<1x16x16x32xf32>
    tpu.vector_store %arg5[%c0_10, %c0_11, %c0_12, %c0_13], %83 {strides = array<i32>} : memref<1x16x16x32xf32, #tpu.memory_space<vmem>>, vector<1x16x16x32xf32>,
    return
  }
  func.func @transform_0(%arg0: i32, %arg1: i32) -> (i32, i32, i32, i32) {
    %c0_i32 = arith.constant 0 : i32
    %c0_i32_0 = arith.constant 0 : i32
    %c0_i32_1 = arith.constant 0 : i32
    return %arg0, %c0_i32, %c0_i32_0, %arg1 : i32, i32, i32, i32
  }
  func.func @transform_1(%arg0: i32, %arg1: i32) -> (i32, i32) {
    %c0_i32 = arith.constant 0 : i32
    %c0_i32_0 = arith.constant 0 : i32
    return %c0_i32, %arg1 : i32, i32
  }
  func.func @transform_2(%arg0: i32, %arg1: i32) -> (i32, i32) {
    %c0_i32 = arith.constant 0 : i32
    %c0_i32_0 = arith.constant 0 : i32
    return %c0_i32, %arg1 : i32, i32
  }
  func.func @transform_3(%arg0: i32, %arg1: i32) -> (i32, i32, i32, i32) {
    %c0_i32 = arith.constant 0 : i32
    %c0_i32_0 = arith.constant 0 : i32
    %c0_i32_1 = arith.constant 0 : i32
    return %arg0, %c0_i32, %c0_i32_0, %arg1 : i32, i32, i32, i32
  }
}

</mosaic_0001>

<llo_original>
// kernel: depthwise_conv_forward.1
$region0: #{depthwise_conv_forward.1}
  #allocation0 [shape = 'u32[]', space=smem, size = 0x4, offset = 0x4, fixed_abs, tag = 'smem constant byte address 0x4 - core index']
  #allocation1 [shape = 'u32[144,128]{1,0:T(1,128)}', space=vmem, size = 0x12000, scoped, tag = 'internal scratch']
  %s0 = inlined_call_operand.vmem [shape: f32[2,18,16,32], index: 0, kind: input, shape index: {}]
  %s1 = inlined_call_operand.vmem [shape: f32[9,32], index: 1, kind: input, shape index: {}]
  %s2 = inlined_call_operand.vmem [shape: f32[1,32], index: 2, kind: input, shape index: {}]
  %s3 = inlined_call_operand.vmem [shape: f32[2,16,16,32], index: 3, kind: output, shape index: {}]
  %s4 = sld [smem:[#allocation0]]
  $region45: #{depthwise_conv_forward.1} parent=0
    _
  %s6 = ssub.s32 1, %s4
  %s7 = scalar_select 0, %s6, %s4
  loop: start=0, step=1, limit=4
  $region2: #{depthwise_conv_forward.1} parent=0 // loop_pre_header
    _
  $region3: #{depthwise_conv_forward.1} parent=0 // loop_header
    %s9 = sphi 0, %s13
    %p10 = scmp.ge.s32.totalorder %s9, 4
    %s16 = sphi 0, %s28
    %s17 = sphi 0, %s24
    %s18 = sphi 0, %s16
    %s19 = sphi 0, %s17
    %s20 = sphi 0, %s18
    %s21 = sphi 0, %s19
    %s33 = sphi 0, %s35
    %s36 = sphi 0, %s33
    %s37 = sphi 0, %s36
    %s53 = sphi 0, %s37
    %s59 = sphi 0, %s61
    %s62 = sphi 0, %s59
    %s63 = sphi 0, %s62
    %s79 = sphi 0, %s63
    %s85 = sphi 0, %s87
    %s88 = sphi 0, %s85
    %s89 = sphi 0, %s88
    %s105 = sphi 0, %s89
    %s113 = sphi 0, %s115
    %s116 = sphi 0, %s113
    %s117 = sphi 0, %s116
    %s133 = sphi 0, %s117
  $region4: #{depthwise_conv_forward.1} parent=0 // loop_header_branch
    %12 = sbr.rel (%p10) target = $region8
  $region5: #{depthwise_conv_forward.1} parent=0 // loop_body
    %s14 = ssub.s32 %s9, 1
    %s15 = ssub.s32 %s9, 2
    %s22 = sadd.s32 1, %s17
    %p23 = scmp.ge.s32.totalorder %s22, 1
    %s24 = scalar_select %p23, 0, %s22
    %s25 = sadd.s32 1, %s16
    %s26 = scalar_select %p23, %s25, %s16
    %p27 = scmp.ge.s32.totalorder %s26, 2
    %s28 = scalar_select %p27, 0, %s26
    %s29 = ssub.s32 %s16, %s28
    %s30 = ssub.s32 %s17, %s24
    %s31 = sor.u32 %s29, %s30
    %p32 = scmp.eq.s32.totalorder %s31, 0
    %s34 = sadd.s32 %s33, 1
    %s35 = scalar_select %p32, %s33, %s34
    %p38 = pneg %p32
    %p39 = scmp.eq.s32.totalorder %s9, 1
    %p40 = por %p38, %p39
    %p41 = scmp.ne.s32.totalorder %s33, %s36
    %p42 = scmp.eq.s32.totalorder %s9, 0
    %p43 = por %p41, %p42
    %p44 = scmp.ne.s32.totalorder %s33, %s36
    %p45 = scmp.eq.s32.totalorder %s14, 1
    %p46 = por %p44, %p45
    %p47 = scmp.ne.s32.totalorder %s36, %s37
    %p48 = scmp.eq.s32.totalorder %s14, 0
    %p49 = por %p47, %p48
    %p50 = scmp.ne.s32.totalorder %s36, %s37
    %p51 = scmp.eq.s32.totalorder %s15, 1
    %p52 = por %p50, %p51
    %p54 = scmp.ne.s32.totalorder %s37, %s53
    %p55 = scmp.eq.s32.totalorder %s15, 0
    %p56 = por %p54, %p55
    %s57 = ssub.s32 %s17, %s24
    %p58 = scmp.eq.s32.totalorder %s57, 0
    %s60 = sadd.s32 %s59, 1
    %s61 = scalar_select %p58, %s59, %s60
    %p64 = pneg %p58
    %p65 = scmp.eq.s32.totalorder %s9, 1
    %p66 = por %p64, %p65
    %p67 = scmp.ne.s32.totalorder %s59, %s62
    %p68 = scmp.eq.s32.totalorder %s9, 0
    %p69 = por %p67, %p68
    %p70 = scmp.ne.s32.totalorder %s59, %s62
    %p71 = scmp.eq.s32.totalorder %s14, 1
    %p72 = por %p70, %p71
    %p73 = scmp.ne.s32.totalorder %s62, %s63
    %p74 = scmp.eq.s32.totalorder %s14, 0
    %p75 = por %p73, %p74
    %p76 = scmp.ne.s32.totalorder %s62, %s63
    %p77 = scmp.eq.s32.totalorder %s15, 1
    %p78 = por %p76, %p77
    %p80 = scmp.ne.s32.totalorder %s63, %s79
    %p81 = scmp.eq.s32.totalorder %s15, 0
    %p82 = por %p80, %p81
    %s83 = ssub.s32 %s17, %s24
    %p84 = scmp.eq.s32.totalorder %s83, 0
    %s86 = sadd.s32 %s85, 1
    %s87 = scalar_select %p84, %s85, %s86
    %p90 = pneg %p84
    %p91 = scmp.eq.s32.totalorder %s9, 1
    %p92 = por %p90, %p91
    %p93 = scmp.ne.s32.totalorder %s85, %s88
    %p94 = scmp.eq.s32.totalorder %s9, 0
    %p95 = por %p93, %p94
    %p96 = scmp.ne.s32.totalorder %s85, %s88
    %p97 = scmp.eq.s32.totalorder %s14, 1
    %p98 = por %p96, %p97
    %p99 = scmp.ne.s32.totalorder %s88, %s89
    %p100 = scmp.eq.s32.totalorder %s14, 0
    %p101 = por %p99, %p100
    %p102 = scmp.ne.s32.totalorder %s88, %s89
    %p103 = scmp.eq.s32.totalorder %s15, 1
    %p104 = por %p102, %p103
    %p106 = scmp.ne.s32.totalorder %s89, %s105
    %p107 = scmp.eq.s32.totalorder %s15, 0
    %p108 = por %p106, %p107
    %s109 = ssub.s32 %s16, %s28
    %s110 = ssub.s32 %s17, %s24
    %s111 = sor.u32 %s109, %s110
    %p112 = scmp.eq.s32.totalorder %s111, 0
    %s114 = sadd.s32 %s113, 1
    %s115 = scalar_select %p112, %s113, %s114
    %p118 = pneg %p112
    %p119 = scmp.eq.s32.totalorder %s9, 1
    %p120 = por %p118, %p119
    %p121 = scmp.ne.s32.totalorder %s113, %s116
    %p122 = scmp.eq.s32.totalorder %s9, 0
    %p123 = por %p121, %p122
    %p124 = scmp.ne.s32.totalorder %s113, %s116
    %p125 = scmp.eq.s32.totalorder %s14, 1
    %p126 = por %p124, %p125
    %p127 = scmp.ne.s32.totalorder %s116, %s117
    %p128 = scmp.eq.s32.totalorder %s14, 0
    %p129 = por %p127, %p128
    %p130 = scmp.ne.s32.totalorder %s116, %s117
    %p131 = scmp.eq.s32.totalorder %s15, 1
    %p132 = por %p130, %p131
    %p134 = scmp.ne.s32.totalorder %s117, %s133
    %p135 = scmp.eq.s32.totalorder %s15, 0
    %p136 = por %p134, %p135
    %p137 = scmp.le.s32.totalorder 1, %s9
    %p138 = scmp.lt.s32.totalorder %s9, 3
    %p139 = pnand %p137, %p138
    %p140 = pneg %p139
    // Predicated region
    $region9: #{depthwise_conv_forward.1} parent=5 // pred_check
      _
    $region10: #{depthwise_conv_forward.1} parent=5 // pred_check_branch
      %142 = sbr.rel (%p139) target = $region12
    $region11: #{depthwise_conv_forward.1} parent=5 // pred_region
      %s143 = ssub.s32 %s9, 1
      // Predicated region
      $region13: #{depthwise_conv_forward.1} parent=11 // pred_check
        %p144 = pneg %p75
      $region14: #{depthwise_conv_forward.1} parent=11 // pred_check_branch
        %146 = sbr.rel (%p144) target = $region16
      $region15: #{depthwise_conv_forward.1} parent=11 // pred_region
        %p147 = scmp.lt.s32.totalorder %s19, 0
        %s148 = scalar_select %p147, %s19, 0
        %s149 = smul.addr %s148, 8
        %s150 = scalar_lea.vmem %s1, %s149
      $region16: #{depthwise_conv_forward.1} parent=11 // pred_fallthru
        _
      // Predicated region
      $region17: #{depthwise_conv_forward.1} parent=11 // pred_check
        %p151 = pneg %p101
      $region18: #{depthwise_conv_forward.1} parent=11 // pred_check_branch
        %153 = sbr.rel (%p151) target = $region20
      $region19: #{depthwise_conv_forward.1} parent=11 // pred_region
        %p154 = scmp.lt.s32.totalorder %s19, 0
        %s155 = scalar_select %p154, %s19, 0
        %s156 = scalar_lea.vmem %s2, %s155
      $region20: #{depthwise_conv_forward.1} parent=11 // pred_fallthru
        _
    $region12: #{depthwise_conv_forward.1} parent=5 // pred_fallthru
      _
    %p157 = scmp.lt.s32.totalorder %s9, 2
    // Predicated region
    $region21: #{depthwise_conv_forward.1} parent=5 // pred_check
      %p158 = pneg %p157
    $region22: #{depthwise_conv_forward.1} parent=5 // pred_check_branch
      %160 = sbr.rel (%p158) target = $region24
    $region23: #{depthwise_conv_forward.1} parent=5 // pred_region
      // Predicated region
      $region25: #{depthwise_conv_forward.1} parent=23 // pred_check
        %p161 = pneg %p43
      $region26: #{depthwise_conv_forward.1} parent=23 // pred_check_branch
        %163 = sbr.rel (%p161) target = $region28
      $region27: #{depthwise_conv_forward.1} parent=23 // pred_region
        %p164 = scmp.lt.s32.totalorder %s16, 1
        %s165 = scalar_select %p164, %s16, 1
        %p166 = scmp.lt.s32.totalorder %s17, 0
        %s167 = scalar_select %p166, %s17, 0
        %s168 = smul.addr %s165, 36
        %s169 = sadd.s32 %s167, %s168
        %s170 = smul.addr %s169, 8
        %s171 = scalar_lea.vmem %s0, %s170
      $region28: #{depthwise_conv_forward.1} parent=23 // pred_fallthru
        _
    $region24: #{depthwise_conv_forward.1} parent=5 // pred_fallthru
      _
    %p172 = scmp.le.s32.totalorder 1, %s9
    %p173 = scmp.lt.s32.totalorder %s9, 3
    %p174 = pnand %p172, %p173
    %p175 = pneg %p174
    // Predicated region
    $region29: #{depthwise_conv_forward.1} parent=5 // pred_check
      _
    $region30: #{depthwise_conv_forward.1} parent=5 // pred_check_branch
      %177 = sbr.rel (%p174) target = $region32
    $region31: #{depthwise_conv_forward.1} parent=5 // pred_region
      %s178 = ssub.s32 %s9, 1
      %p179 = scmp.lt.s32.totalorder %s18, 1
      %s180 = scalar_select %p179, %s18, 1
      %p181 = scmp.lt.s32.totalorder %s19, 0
      %s182 = scalar_select %p181, %s19, 0
      %s183 = smul.addr %s180, 36
      %s184 = sadd.s32 %s182, %s183
      %s185 = smul.addr %s184, 8
      %s186 = scalar_lea.vmem %s0, %s185
      %p187 = pneg %p49
      %p188 = pneg %p46
      %p189 = scmp.lt.s32.totalorder %s19, 0
      %s190 = scalar_select %p189, %s19, 0
      %s191 = smul.addr %s190, 8
      %s192 = scalar_lea.vmem %s1, %s191
      %p193 = pneg %p75
      %p194 = pneg %p72
      %p195 = scmp.lt.s32.totalorder %s19, 0
      %s196 = scalar_select %p195, %s19, 0
      %s197 = scalar_lea.vmem %s2, %s196
      %p198 = pneg %p101
      %p199 = pneg %p98
      %p200 = pneg %p129
      %p201 = pneg %p126
      %p202 = scmp.lt.s32.totalorder %s18, 1
      %s203 = scalar_select %p202, %s18, 1
      %p204 = scmp.lt.s32.totalorder %s19, 0
      %s205 = scalar_select %p204, %s19, 0
      %s206 = smul.addr %s203, 32
      %s207 = sadd.s32 %s205, %s206
      %s208 = smul.addr %s207, 8
      %s209 = scalar_lea.vmem %s3, %s208
      %p210 = scmp.lt.s32.totalorder %s18, 1
      %s211 = scalar_select %p210, %s18, 1
      %p212 = scmp.lt.s32.totalorder %s19, 0
      %s213 = scalar_select %p212, %s19, 0
      %s214 = smul.addr %s211, 36
      %s215 = sadd.s32 %s213, %s214
      %s216 = smul.addr %s215, 8
      %s217 = scalar_lea.vmem %s0, %s216
      %p218 = scmp.lt.s32.totalorder %s19, 0
      %s219 = scalar_select %p218, %s19, 0
      %s220 = smul.addr %s219, 8
      %s221 = scalar_lea.vmem %s1, %s220
      %p222 = scmp.lt.s32.totalorder %s19, 0
      %s223 = scalar_select %p222, %s19, 0
      %s224 = scalar_lea.vmem %s2, %s223
      %p225 = scmp.lt.s32.totalorder %s18, 1
      %s226 = scalar_select %p225, %s18, 1
      %p227 = scmp.lt.s32.totalorder %s19, 0
      %s228 = scalar_select %p227, %s19, 0
      %s229 = smul.addr %s226, 32
      %s230 = sadd.s32 %s228, %s229
      %s231 = smul.addr %s230, 8
      %s232 = scalar_lea.vmem %s3, %s231
      %v233 = vld [vmem:[%s217] sm:$0xff]
      %v234 = vld [vmem:[%s217 + $0x8] sm:$0xff]
      %v235 = vld [vmem:[%s217 + $0x10] sm:$0xff]
      %v236 = vld [vmem:[%s217 + $0x18] sm:$0xff]
      %v237 = vld [vmem:[%s217 + $0x20] sm:$0xff]
      %v238 = vld [vmem:[%s217 + $0x28] sm:$0xff]
      %v239 = vld [vmem:[%s217 + $0x30] sm:$0xff]
      %v240 = vld [vmem:[%s217 + $0x38] sm:$0xff]
      %v241 = vld [vmem:[%s217 + $0x40] sm:$0xff]
      %v242 = vld [vmem:[%s217 + $0x48] sm:$0xff]
      %v243 = vld [vmem:[%s217 + $0x50] sm:$0xff]
      %v244 = vld [vmem:[%s217 + $0x58] sm:$0xff]
      %v245 = vld [vmem:[%s217 + $0x60] sm:$0xff]
      %v246 = vld [vmem:[%s217 + $0x68] sm:$0xff]
      %v247 = vld [vmem:[%s217 + $0x70] sm:$0xff]
      %v248 = vld [vmem:[%s217 + $0x78] sm:$0xff]
      %v249 = vld [vmem:[%s217 + $0x80] sm:$0xff]
      %v250 = vld [vmem:[%s217 + $0x88] sm:$0xff]
      %v251 = vld [vmem:[%s217 + $0x90] sm:$0xff]
      %v252 = vld [vmem:[%s217 + $0x98] sm:$0xff]
      %v253 = vld [vmem:[%s217 + $0xa0] sm:$0xff]
      %v254 = vld [vmem:[%s217 + $0xa8] sm:$0xff]
      %v255 = vld [vmem:[%s217 + $0xb0] sm:$0xff]
      %v256 = vld [vmem:[%s217 + $0xb8] sm:$0xff]
      %v257 = vld [vmem:[%s217 + $0xc0] sm:$0xff]
      %v258 = vld [vmem:[%s217 + $0xc8] sm:$0xff]
      %v259 = vld [vmem:[%s217 + $0xd0] sm:$0xff]
      %v260 = vld [vmem:[%s217 + $0xd8] sm:$0xff]
      %v261 = vld [vmem:[%s217 + $0xe0] sm:$0xff]
      %v262 = vld [vmem:[%s217 + $0xe8] sm:$0xff]
      %v263 = vld [vmem:[%s217 + $0xf0] sm:$0xff]
      %v264 = vld [vmem:[%s217 + $0xf8] sm:$0xff]
      %v265 = vld [vmem:[%s217 + $0x100] sm:$0xff]
      %v266 = vld [vmem:[%s217 + $0x108] sm:$0xff]
      %v267 = vld [vmem:[%s217 + $0x110] sm:$0xff]
      %v268 = vld [vmem:[%s217 + $0x118] sm:$0xff]
      %v269 = vld [vmem:[%s221] sm:$0xff]
      %v270 = vld [vmem:[%s221 + $0x8] sm:$0x1]
      %v271 = vld [vmem:[%s224] sm:$0x1]
      %v272 = vlaneseq
      %v273 = vshrl.u32 %v272, 7
      %v274 = vadd.s32 %v273, 8
      %v275 = vrot.slane %v233, 7
      %v276 = vrot.slane %v235, 7
      %v277 = vrot.slane %v237, 7
      %v278 = vrot.slane %v239, 7
      %v279 = vrot.slane %v241, 7
      %v280 = vrot.slane %v243, 7
      %v281 = vrot.slane %v245, 7
      %v282 = vrot.slane %v247, 7
      %v283 = vrot.slane %v249, 7
      %v284 = vrot.slane %v251, 7
      %v285 = vrot.slane %v253, 7
      %v286 = vrot.slane %v255, 7
      %v287 = vrot.slane %v257, 7
      %v288 = vrot.slane %v259, 7
      %v289 = vrot.slane %v261, 7
      %v290 = vrot.slane %v263, 7
      %v291 = vrot.slane %v265, 7
      %v292 = vrot.slane %v267, 7
      %v293 = vrot.slane %v234, 7
      %v294 = vrot.slane %v236, 7
      %v295 = vrot.slane %v238, 7
      %v296 = vrot.slane %v240, 7
      %v297 = vrot.slane %v242, 7
      %v298 = vrot.slane %v244, 7
      %v299 = vrot.slane %v246, 7
      %v300 = vrot.slane %v248, 7
      %v301 = vrot.slane %v250, 7
      %v302 = vrot.slane %v252, 7
      %v303 = vrot.slane %v254, 7
      %v304 = vrot.slane %v256, 7
      %v305 = vrot.slane %v258, 7
      %v306 = vrot.slane %v260, 7
      %v307 = vrot.slane %v262, 7
      %v308 = vrot.slane %v264, 7
      %v309 = vrot.slane %v266, 7
      %v310 = vrot.slane %v268, 7
      %vm311 = vcmp.lt.s32.totalorder %v273, 1
      %v312 = vsel %vm311, %v275, %v293
      %v313 = vsel %vm311, %v276, %v294
      %v314 = vsel %vm311, %v277, %v295
      %v315 = vsel %vm311, %v278, %v296
      %v316 = vsel %vm311, %v279, %v297
      %v317 = vsel %vm311, %v280, %v298
      %v318 = vsel %vm311, %v281, %v299
      %v319 = vsel %vm311, %v282, %v300
      %v320 = vsel %vm311, %v283, %v301
      %v321 = vsel %vm311, %v284, %v302
      %v322 = vsel %vm311, %v285, %v303
      %v323 = vsel %vm311, %v286, %v304
      %v324 = vsel %vm311, %v287, %v305
      %v325 = vsel %vm311, %v288, %v306
      %v326 = vsel %vm311, %v289, %v307
      %v327 = vsel %vm311, %v290, %v308
      %v328 = vsel %vm311, %v291, %v309
      %v329 = vsel %vm311, %v292, %v310
      %v330 = vsel %vm311, %v293, %v275
      %v331 = vsel %vm311, %v294, %v276
      %v332 = vsel %vm311, %v295, %v277
      %v333 = vsel %vm311, %v296, %v278
      %v334 = vsel %vm311, %v297, %v279
      %v335 = vsel %vm311, %v298, %v280
      %v336 = vsel %vm311, %v299, %v281
      %v337 = vsel %vm311, %v300, %v282
      %v338 = vsel %vm311, %v301, %v283
      %v339 = vsel %vm311, %v302, %v284
      %v340 = vsel %vm311, %v303, %v285
      %v341 = vsel %vm311, %v304, %v286
      %v342 = vsel %vm311, %v305, %v287
      %v343 = vsel %vm311, %v306, %v288
      %v344 = vsel %vm311, %v307, %v289
      %v345 = vsel %vm311, %v308, %v290
      %v346 = vsel %vm311, %v309, %v291
      %v347 = vsel %vm311, %v310, %v292
      %vm348 = vcmp.eq.s32.totalorder %v273, 0
      %vm349 = vcmp.eq.s32.totalorder %v274, 0
      %v350 = vsel %vm348, 0.0, %v330
      %v351 = vsel %vm349, 0.0, %v312
      %v352 = vsel %vm348, 0.0, %v331
      %v353 = vsel %vm349, 0.0, %v313
      %v354 = vsel %vm348, 0.0, %v332
      %v355 = vsel %vm349, 0.0, %v314
      %v356 = vsel %vm348, 0.0, %v333
      %v357 = vsel %vm349, 0.0, %v315
      %v358 = vsel %vm348, 0.0, %v334
      %v359 = vsel %vm349, 0.0, %v316
      %v360 = vsel %vm348, 0.0, %v335
      %v361 = vsel %vm349, 0.0, %v317
      %v362 = vsel %vm348, 0.0, %v336
      %v363 = vsel %vm349, 0.0, %v318
      %v364 = vsel %vm348, 0.0, %v337
      %v365 = vsel %vm349, 0.0, %v319
      %v366 = vsel %vm348, 0.0, %v338
      %v367 = vsel %vm349, 0.0, %v320
      %v368 = vsel %vm348, 0.0, %v339
      %v369 = vsel %vm349, 0.0, %v321
      %v370 = vsel %vm348, 0.0, %v340
      %v371 = vsel %vm349, 0.0, %v322
      %v372 = vsel %vm348, 0.0, %v341
      %v373 = vsel %vm349, 0.0, %v323
      %v374 = vsel %vm348, 0.0, %v342
      %v375 = vsel %vm349, 0.0, %v324
      %v376 = vsel %vm348, 0.0, %v343
      %v377 = vsel %vm349, 0.0, %v325
      %v378 = vsel %vm348, 0.0, %v344
      %v379 = vsel %vm349, 0.0, %v326
      %v380 = vsel %vm348, 0.0, %v345
      %v381 = vsel %vm349, 0.0, %v327
      %v382 = vsel %vm348, 0.0, %v346
      %v383 = vsel %vm349, 0.0, %v328
      %v384 = vsel %vm348, 0.0, %v347
      %v385 = vsel %vm349, 0.0, %v329
      %v386 = vrot.slane %v233, 1
      %v387 = vrot.slane %v235, 1
      %v388 = vrot.slane %v237, 1
      %v389 = vrot.slane %v239, 1
      %v390 = vrot.slane %v241, 1
      %v391 = vrot.slane %v243, 1
      %v392 = vrot.slane %v245, 1
      %v393 = vrot.slane %v247, 1
      %v394 = vrot.slane %v249, 1
      %v395 = vrot.slane %v251, 1
      %v396 = vrot.slane %v253, 1
      %v397 = vrot.slane %v255, 1
      %v398 = vrot.slane %v257, 1
      %v399 = vrot.slane %v259, 1
      %v400 = vrot.slane %v261, 1
      %v401 = vrot.slane %v263, 1
      %v402 = vrot.slane %v265, 1
      %v403 = vrot.slane %v267, 1
      %v404 = vrot.slane %v234, 1
      %v405 = vrot.slane %v236, 1
      %v406 = vrot.slane %v238, 1
      %v407 = vrot.slane %v240, 1
      %v408 = vrot.slane %v242, 1
      %v409 = vrot.slane %v244, 1
      %v410 = vrot.slane %v246, 1
      %v411 = vrot.slane %v248, 1
      %v412 = vrot.slane %v250, 1
      %v413 = vrot.slane %v252, 1
      %v414 = vrot.slane %v254, 1
      %v415 = vrot.slane %v256, 1
      %v416 = vrot.slane %v258, 1
      %v417 = vrot.slane %v260, 1
      %v418 = vrot.slane %v262, 1
      %v419 = vrot.slane %v264, 1
      %v420 = vrot.slane %v266, 1
      %v421 = vrot.slane %v268, 1
      %vm422 = vcmp.lt.s32.totalorder %v273, 7
      %v423 = vsel %vm422, %v386, %v404
      %v424 = vsel %vm422, %v387, %v405
      %v425 = vsel %vm422, %v388, %v406
      %v426 = vsel %vm422, %v389, %v407
      %v427 = vsel %vm422, %v390, %v408
      %v428 = vsel %vm422, %v391, %v409
      %v429 = vsel %vm422, %v392, %v410
      %v430 = vsel %vm422, %v393, %v411
      %v431 = vsel %vm422, %v394, %v412
      %v432 = vsel %vm422, %v395, %v413
      %v433 = vsel %vm422, %v396, %v414
      %v434 = vsel %vm422, %v397, %v415
      %v435 = vsel %vm422, %v398, %v416
      %v436 = vsel %vm422, %v399, %v417
      %v437 = vsel %vm422, %v400, %v418
      %v438 = vsel %vm422, %v401, %v419
      %v439 = vsel %vm422, %v402, %v420
      %v440 = vsel %vm422, %v403, %v421
      %v441 = vsel %vm422, %v404, %v386
      %v442 = vsel %vm422, %v405, %v387
      %v443 = vsel %vm422, %v406, %v388
      %v444 = vsel %vm422, %v407, %v389
      %v445 = vsel %vm422, %v408, %v390
      %v446 = vsel %vm422, %v409, %v391
      %v447 = vsel %vm422, %v410, %v392
      %v448 = vsel %vm422, %v411, %v393
      %v449 = vsel %vm422, %v412, %v394
      %v450 = vsel %vm422, %v413, %v395
      %v451 = vsel %vm422, %v414, %v396
      %v452 = vsel %vm422, %v415, %v397
      %v453 = vsel %vm422, %v416, %v398
      %v454 = vsel %vm422, %v417, %v399
      %v455 = vsel %vm422, %v418, %v400
      %v456 = vsel %vm422, %v419, %v401
      %v457 = vsel %vm422, %v420, %v402
      %v458 = vsel %vm422, %v421, %v403
      %vm459 = vcmp.eq.s32.totalorder %v273, 15
      %vm460 = vcmp.eq.s32.totalorder %v274, 15
      %v461 = vsel %vm459, 0.0, %v423
      %v462 = vsel %vm460, 0.0, %v441
      %v463 = vsel %vm459, 0.0, %v424
      %v464 = vsel %vm460, 0.0, %v442
      %v465 = vsel %vm459, 0.0, %v425
      %v466 = vsel %vm460, 0.0, %v443
      %v467 = vsel %vm459, 0.0, %v426
      %v468 = vsel %vm460, 0.0, %v444
      %v469 = vsel %vm459, 0.0, %v427
      %v470 = vsel %vm460, 0.0, %v445
      %v471 = vsel %vm459, 0.0, %v428
      %v472 = vsel %vm460, 0.0, %v446
      %v473 = vsel %vm459, 0.0, %v429
      %v474 = vsel %vm460, 0.0, %v447
      %v475 = vsel %vm459, 0.0, %v430
      %v476 = vsel %vm460, 0.0, %v448
      %v477 = vsel %vm459, 0.0, %v431
      %v478 = vsel %vm460, 0.0, %v449
      %v479 = vsel %vm459, 0.0, %v432
      %v480 = vsel %vm460, 0.0, %v450
      %v481 = vsel %vm459, 0.0, %v433
      %v482 = vsel %vm460, 0.0, %v451
      %v483 = vsel %vm459, 0.0, %v434
      %v484 = vsel %vm460, 0.0, %v452
      %v485 = vsel %vm459, 0.0, %v435
      %v486 = vsel %vm460, 0.0, %v453
      %v487 = vsel %vm459, 0.0, %v436
      %v488 = vsel %vm460, 0.0, %v454
      %v489 = vsel %vm459, 0.0, %v437
      %v490 = vsel %vm460, 0.0, %v455
      %v491 = vsel %vm459, 0.0, %v438
      %v492 = vsel %vm460, 0.0, %v456
      %v493 = vsel %vm459, 0.0, %v439
      %v494 = vsel %vm460, 0.0, %v457
      %v495 = vsel %vm459, 0.0, %v440
      %v496 = vsel %vm460, 0.0, %v458
      %v497 = vlaneseq
      %v498 = vshrl.u32 %v497, 7
      %v499 = vsub.s32 0, %v498
      %v500 = vrot.slane %v269, %v499
      %v501 = vmul.f32 %v350, %v500
      %v502 = vmul.f32 %v351, %v500
      %v503 = vmul.f32 %v352, %v500
      %v504 = vmul.f32 %v353, %v500
      %v505 = vmul.f32 %v354, %v500
      %v506 = vmul.f32 %v355, %v500
      %v507 = vmul.f32 %v356, %v500
      %v508 = vmul.f32 %v357, %v500
      %v509 = vmul.f32 %v358, %v500
      %v510 = vmul.f32 %v359, %v500
      %v511 = vmul.f32 %v360, %v500
      %v512 = vmul.f32 %v361, %v500
      %v513 = vmul.f32 %v362, %v500
      %v514 = vmul.f32 %v363, %v500
      %v515 = vmul.f32 %v364, %v500
      %v516 = vmul.f32 %v365, %v500
      %v517 = vmul.f32 %v366, %v500
      %v518 = vmul.f32 %v367, %v500
      %v519 = vmul.f32 %v368, %v500
      %v520 = vmul.f32 %v369, %v500
      %v521 = vmul.f32 %v370, %v500
      %v522 = vmul.f32 %v371, %v500
      %v523 = vmul.f32 %v372, %v500
      %v524 = vmul.f32 %v373, %v500
      %v525 = vmul.f32 %v374, %v500
      %v526 = vmul.f32 %v375, %v500
      %v527 = vmul.f32 %v376, %v500
      %v528 = vmul.f32 %v377, %v500
      %v529 = vmul.f32 %v378, %v500
      %v530 = vmul.f32 %v379, %v500
      %v531 = vmul.f32 %v380, %v500
      %v532 = vmul.f32 %v381, %v500
      %v533 = vadd.f32 %v501, 0.0
      %v534 = vadd.f32 %v502, 0.0
      %v535 = vadd.f32 %v503, 0.0
      %v536 = vadd.f32 %v504, 0.0
      %v537 = vadd.f32 %v505, 0.0
      %v538 = vadd.f32 %v506, 0.0
      %v539 = vadd.f32 %v507, 0.0
      %v540 = vadd.f32 %v508, 0.0
      %v541 = vadd.f32 %v509, 0.0
      %v542 = vadd.f32 %v510, 0.0
      %v543 = vadd.f32 %v511, 0.0
      %v544 = vadd.f32 %v512, 0.0
      %v545 = vadd.f32 %v513, 0.0
      %v546 = vadd.f32 %v514, 0.0
      %v547 = vadd.f32 %v515, 0.0
      %v548 = vadd.f32 %v516, 0.0
      %v549 = vadd.f32 %v517, 0.0
      %v550 = vadd.f32 %v518, 0.0
      %v551 = vadd.f32 %v519, 0.0
      %v552 = vadd.f32 %v520, 0.0
      %v553 = vadd.f32 %v521, 0.0
      %v554 = vadd.f32 %v522, 0.0
      %v555 = vadd.f32 %v523, 0.0
      %v556 = vadd.f32 %v524, 0.0
      %v557 = vadd.f32 %v525, 0.0
      %v558 = vadd.f32 %v526, 0.0
      %v559 = vadd.f32 %v527, 0.0
      %v560 = vadd.f32 %v528, 0.0
      %v561 = vadd.f32 %v529, 0.0
      %v562 = vadd.f32 %v530, 0.0
      %v563 = vadd.f32 %v531, 0.0
      %v564 = vadd.f32 %v532, 0.0
      %v565 = vlaneseq
      %v566 = vshrl.u32 %v565, 7
      %v567 = vsub.s32 1, %v566
      %v568 = vrot.slane %v269, %v567
      %v569 = vmul.f32 %v233, %v568
      %v570 = vmul.f32 %v234, %v568
      %v571 = vmul.f32 %v235, %v568
      %v572 = vmul.f32 %v236, %v568
      %v573 = vmul.f32 %v237, %v568
      %v574 = vmul.f32 %v238, %v568
      %v575 = vmul.f32 %v239, %v568
      %v576 = vmul.f32 %v240, %v568
      %v577 = vmul.f32 %v241, %v568
      %v578 = vmul.f32 %v242, %v568
      %v579 = vmul.f32 %v243, %v568
      %v580 = vmul.f32 %v244, %v568
      %v581 = vmul.f32 %v245, %v568
      %v582 = vmul.f32 %v246, %v568
      %v583 = vmul.f32 %v247, %v568
      %v584 = vmul.f32 %v248, %v568
      %v585 = vmul.f32 %v249, %v568
      %v586 = vmul.f32 %v250, %v568
      %v587 = vmul.f32 %v251, %v568
      %v588 = vmul.f32 %v252, %v568
      %v589 = vmul.f32 %v253, %v568
      %v590 = vmul.f32 %v254, %v568
      %v591 = vmul.f32 %v255, %v568
      %v592 = vmul.f32 %v256, %v568
      %v593 = vmul.f32 %v257, %v568
      %v594 = vmul.f32 %v258, %v568
      %v595 = vmul.f32 %v259, %v568
      %v596 = vmul.f32 %v260, %v568
      %v597 = vmul.f32 %v261, %v568
      %v598 = vmul.f32 %v262, %v568
      %v599 = vmul.f32 %v263, %v568
      %v600 = vmul.f32 %v264, %v568
      %v601 = vadd.f32 %v533, %v569
      %v602 = vadd.f32 %v534, %v570
      %v603 = vadd.f32 %v535, %v571
      %v604 = vadd.f32 %v536, %v572
      %v605 = vadd.f32 %v537, %v573
      %v606 = vadd.f32 %v538, %v574
      %v607 = vadd.f32 %v539, %v575
      %v608 = vadd.f32 %v540, %v576
      %v609 = vadd.f32 %v541, %v577
      %v610 = vadd.f32 %v542, %v578
      %v611 = vadd.f32 %v543, %v579
      %v612 = vadd.f32 %v544, %v580
      %v613 = vadd.f32 %v545, %v581
      %v614 = vadd.f32 %v546, %v582
      %v615 = vadd.f32 %v547, %v583
      %v616 = vadd.f32 %v548, %v584
      %v617 = vadd.f32 %v549, %v585
      %v618 = vadd.f32 %v550, %v586
      %v619 = vadd.f32 %v551, %v587
      %v620 = vadd.f32 %v552, %v588
      %v621 = vadd.f32 %v553, %v589
      %v622 = vadd.f32 %v554, %v590
      %v623 = vadd.f32 %v555, %v591
      %v624 = vadd.f32 %v556, %v592
      %v625 = vadd.f32 %v557, %v593
      %v626 = vadd.f32 %v558, %v594
      %v627 = vadd.f32 %v559, %v595
      %v628 = vadd.f32 %v560, %v596
      %v629 = vadd.f32 %v561, %v597
      %v630 = vadd.f32 %v562, %v598
      %v631 = vadd.f32 %v563, %v599
      %v632 = vadd.f32 %v564, %v600
      %v633 = vlaneseq
      %v634 = vshrl.u32 %v633, 7
      %v635 = vsub.s32 2, %v634
      %v636 = vrot.slane %v269, %v635
      %v637 = vmul.f32 %v461, %v636
      %v638 = vmul.f32 %v462, %v636
      %v639 = vmul.f32 %v463, %v636
      %v640 = vmul.f32 %v464, %v636
      %v641 = vmul.f32 %v465, %v636
      %v642 = vmul.f32 %v466, %v636
      %v643 = vmul.f32 %v467, %v636
      %v644 = vmul.f32 %v468, %v636
      %v645 = vmul.f32 %v469, %v636
      %v646 = vmul.f32 %v470, %v636
      %v647 = vmul.f32 %v471, %v636
      %v648 = vmul.f32 %v472, %v636
      %v649 = vmul.f32 %v473, %v636
      %v650 = vmul.f32 %v474, %v636
      %v651 = vmul.f32 %v475, %v636
      %v652 = vmul.f32 %v476, %v636
      %v653 = vmul.f32 %v477, %v636
      %v654 = vmul.f32 %v478, %v636
      %v655 = vmul.f32 %v479, %v636
      %v656 = vmul.f32 %v480, %v636
      %v657 = vmul.f32 %v481, %v636
      %v658 = vmul.f32 %v482, %v636
      %v659 = vmul.f32 %v483, %v636
      %v660 = vmul.f32 %v484, %v636
      %v661 = vmul.f32 %v485, %v636
      %v662 = vmul.f32 %v486, %v636
      %v663 = vmul.f32 %v487, %v636
      %v664 = vmul.f32 %v488, %v636
      %v665 = vmul.f32 %v489, %v636
      %v666 = vmul.f32 %v490, %v636
      %v667 = vmul.f32 %v491, %v636
      %v668 = vmul.f32 %v492, %v636
      %v669 = vadd.f32 %v601, %v637
      %v670 = vadd.f32 %v602, %v638
      %v671 = vadd.f32 %v603, %v639
      %v672 = vadd.f32 %v604, %v640
      %v673 = vadd.f32 %v605, %v641
      %v674 = vadd.f32 %v606, %v642
      %v675 = vadd.f32 %v607, %v643
      %v676 = vadd.f32 %v608, %v644
      %v677 = vadd.f32 %v609, %v645
      %v678 = vadd.f32 %v610, %v646
      %v679 = vadd.f32 %v611, %v647
      %v680 = vadd.f32 %v612, %v648
      %v681 = vadd.f32 %v613, %v649
      %v682 = vadd.f32 %v614, %v650
      %v683 = vadd.f32 %v615, %v651
      %v684 = vadd.f32 %v616, %v652
      %v685 = vadd.f32 %v617, %v653
      %v686 = vadd.f32 %v618, %v654
      %v687 = vadd.f32 %v619, %v655
      %v688 = vadd.f32 %v620, %v656
      %v689 = vadd.f32 %v621, %v657
      %v690 = vadd.f32 %v622, %v658
      %v691 = vadd.f32 %v623, %v659
      %v692 = vadd.f32 %v624, %v660
      %v693 = vadd.f32 %v625, %v661
      %v694 = vadd.f32 %v626, %v662
      %v695 = vadd.f32 %v627, %v663
      %v696 = vadd.f32 %v628, %v664
      %v697 = vadd.f32 %v629, %v665
      %v698 = vadd.f32 %v630, %v666
      %v699 = vadd.f32 %v631, %v667
      %v700 = vadd.f32 %v632, %v668
      %v701 = vlaneseq
      %v702 = vshrl.u32 %v701, 7
      %v703 = vsub.s32 3, %v702
      %v704 = vrot.slane %v269, %v703
      %v705 = vmul.f32 %v352, %v704
      %v706 = vmul.f32 %v353, %v704
      %v707 = vmul.f32 %v354, %v704
      %v708 = vmul.f32 %v355, %v704
      %v709 = vmul.f32 %v356, %v704
      %v710 = vmul.f32 %v357, %v704
      %v711 = vmul.f32 %v358, %v704
      %v712 = vmul.f32 %v359, %v704
      %v713 = vmul.f32 %v360, %v704
      %v714 = vmul.f32 %v361, %v704
      %v715 = vmul.f32 %v362, %v704
      %v716 = vmul.f32 %v363, %v704
      %v717 = vmul.f32 %v364, %v704
      %v718 = vmul.f32 %v365, %v704
      %v719 = vmul.f32 %v366, %v704
      %v720 = vmul.f32 %v367, %v704
      %v721 = vmul.f32 %v368, %v704
      %v722 = vmul.f32 %v369, %v704
      %v723 = vmul.f32 %v370, %v704
      %v724 = vmul.f32 %v371, %v704
      %v725 = vmul.f32 %v372, %v704
      %v726 = vmul.f32 %v373, %v704
      %v727 = vmul.f32 %v374, %v704
      %v728 = vmul.f32 %v375, %v704
      %v729 = vmul.f32 %v376, %v704
      %v730 = vmul.f32 %v377, %v704
      %v731 = vmul.f32 %v378, %v704
      %v732 = vmul.f32 %v379, %v704
      %v733 = vmul.f32 %v380, %v704
      %v734 = vmul.f32 %v381, %v704
      %v735 = vmul.f32 %v382, %v704
      %v736 = vmul.f32 %v383, %v704
      %v737 = vadd.f32 %v669, %v705
      %v738 = vadd.f32 %v670, %v706
      %v739 = vadd.f32 %v671, %v707
      %v740 = vadd.f32 %v672, %v708
      %v741 = vadd.f32 %v673, %v709
      %v742 = vadd.f32 %v674, %v710
      %v743 = vadd.f32 %v675, %v711
      %v744 = vadd.f32 %v676, %v712
      %v745 = vadd.f32 %v677, %v713
      %v746 = vadd.f32 %v678, %v714
      %v747 = vadd.f32 %v679, %v715
      %v748 = vadd.f32 %v680, %v716
      %v749 = vadd.f32 %v681, %v717
      %v750 = vadd.f32 %v682, %v718
      %v751 = vadd.f32 %v683, %v719
      %v752 = vadd.f32 %v684, %v720
      %v753 = vadd.f32 %v685, %v721
      %v754 = vadd.f32 %v686, %v722
      %v755 = vadd.f32 %v687, %v723
      %v756 = vadd.f32 %v688, %v724
      %v757 = vadd.f32 %v689, %v725
      %v758 = vadd.f32 %v690, %v726
      %v759 = vadd.f32 %v691, %v727
      %v760 = vadd.f32 %v692, %v728
      %v761 = vadd.f32 %v693, %v729
      %v762 = vadd.f32 %v694, %v730
      %v763 = vadd.f32 %v695, %v731
      %v764 = vadd.f32 %v696, %v732
      %v765 = vadd.f32 %v697, %v733
      %v766 = vadd.f32 %v698, %v734
      %v767 = vadd.f32 %v699, %v735
      %v768 = vadd.f32 %v700, %v736
      %v769 = vlaneseq
      %v770 = vshrl.u32 %v769, 7
      %v771 = vsub.s32 4, %v770
      %v772 = vrot.slane %v269, %v771
      %v773 = vmul.f32 %v235, %v772
      %v774 = vmul.f32 %v236, %v772
      %v775 = vmul.f32 %v237, %v772
      %v776 = vmul.f32 %v238, %v772
      %v777 = vmul.f32 %v239, %v772
      %v778 = vmul.f32 %v240, %v772
      %v779 = vmul.f32 %v241, %v772
      %v780 = vmul.f32 %v242, %v772
      %v781 = vmul.f32 %v243, %v772
      %v782 = vmul.f32 %v244, %v772
      %v783 = vmul.f32 %v245, %v772
      %v784 = vmul.f32 %v246, %v772
      %v785 = vmul.f32 %v247, %v772
      %v786 = vmul.f32 %v248, %v772
      %v787 = vmul.f32 %v249, %v772
      %v788 = vmul.f32 %v250, %v772
      %v789 = vmul.f32 %v251, %v772
      %v790 = vmul.f32 %v252, %v772
      %v791 = vmul.f32 %v253, %v772
      %v792 = vmul.f32 %v254, %v772
      %v793 = vmul.f32 %v255, %v772
      %v794 = vmul.f32 %v256, %v772
      %v795 = vmul.f32 %v257, %v772
      %v796 = vmul.f32 %v258, %v772
      %v797 = vmul.f32 %v259, %v772
      %v798 = vmul.f32 %v260, %v772
      %v799 = vmul.f32 %v261, %v772
      %v800 = vmul.f32 %v262, %v772
      %v801 = vmul.f32 %v263, %v772
      %v802 = vmul.f32 %v264, %v772
      %v803 = vmul.f32 %v265, %v772
      %v804 = vmul.f32 %v266, %v772
      %v805 = vadd.f32 %v737, %v773
      %v806 = vadd.f32 %v738, %v774
      %v807 = vadd.f32 %v739, %v775
      %v808 = vadd.f32 %v740, %v776
      %v809 = vadd.f32 %v741, %v777
      %v810 = vadd.f32 %v742, %v778
      %v811 = vadd.f32 %v743, %v779
      %v812 = vadd.f32 %v744, %v780
      %v813 = vadd.f32 %v745, %v781
      %v814 = vadd.f32 %v746, %v782
      %v815 = vadd.f32 %v747, %v783
      %v816 = vadd.f32 %v748, %v784
      %v817 = vadd.f32 %v749, %v785
      %v818 = vadd.f32 %v750, %v786
      %v819 = vadd.f32 %v751, %v787
      %v820 = vadd.f32 %v752, %v788
      %v821 = vadd.f32 %v753, %v789
      %v822 = vadd.f32 %v754, %v790
      %v823 = vadd.f32 %v755, %v791
      %v824 = vadd.f32 %v756, %v792
      %v825 = vadd.f32 %v757, %v793
      %v826 = vadd.f32 %v758, %v794
      %v827 = vadd.f32 %v759, %v795
      %v828 = vadd.f32 %v760, %v796
      %v829 = vadd.f32 %v761, %v797
      %v830 = vadd.f32 %v762, %v798
      %v831 = vadd.f32 %v763, %v799
      %v832 = vadd.f32 %v764, %v800
      %v833 = vadd.f32 %v765, %v801
      %v834 = vadd.f32 %v766, %v802
      %v835 = vadd.f32 %v767, %v803
      %v836 = vadd.f32 %v768, %v804
      %v837 = vlaneseq
      %v838 = vshrl.u32 %v837, 7
      %v839 = vsub.s32 5, %v838
      %v840 = vrot.slane %v269, %v839
      %v841 = vmul.f32 %v463, %v840
      %v842 = vmul.f32 %v464, %v840
      %v843 = vmul.f32 %v465, %v840
      %v844 = vmul.f32 %v466, %v840
      %v845 = vmul.f32 %v467, %v840
      %v846 = vmul.f32 %v468, %v840
      %v847 = vmul.f32 %v469, %v840
      %v848 = vmul.f32 %v470, %v840
      %v849 = vmul.f32 %v471, %v840
      %v850 = vmul.f32 %v472, %v840
      %v851 = vmul.f32 %v473, %v840
      %v852 = vmul.f32 %v474, %v840
      %v853 = vmul.f32 %v475, %v840
      %v854 = vmul.f32 %v476, %v840
      %v855 = vmul.f32 %v477, %v840
      %v856 = vmul.f32 %v478, %v840
      %v857 = vmul.f32 %v479, %v840
      %v858 = vmul.f32 %v480, %v840
      %v859 = vmul.f32 %v481, %v840
      %v860 = vmul.f32 %v482, %v840
      %v861 = vmul.f32 %v483, %v840
      %v862 = vmul.f32 %v484, %v840
      %v863 = vmul.f32 %v485, %v840
      %v864 = vmul.f32 %v486, %v840
      %v865 = vmul.f32 %v487, %v840
      %v866 = vmul.f32 %v488, %v840
      %v867 = vmul.f32 %v489, %v840
      %v868 = vmul.f32 %v490, %v840
      %v869 = vmul.f32 %v491, %v840
      %v870 = vmul.f32 %v492, %v840
      %v871 = vmul.f32 %v493, %v840
      %v872 = vmul.f32 %v494, %v840
      %v873 = vadd.f32 %v805, %v841
      %v874 = vadd.f32 %v806, %v842
      %v875 = vadd.f32 %v807, %v843
      %v876 = vadd.f32 %v808, %v844
      %v877 = vadd.f32 %v809, %v845
      %v878 = vadd.f32 %v810, %v846
      %v879 = vadd.f32 %v811, %v847
      %v880 = vadd.f32 %v812, %v848
      %v881 = vadd.f32 %v813, %v849
      %v882 = vadd.f32 %v814, %v850
      %v883 = vadd.f32 %v815, %v851
      %v884 = vadd.f32 %v816, %v852
      %v885 = vadd.f32 %v817, %v853
      %v886 = vadd.f32 %v818, %v854
      %v887 = vadd.f32 %v819, %v855
      %v888 = vadd.f32 %v820, %v856
      %v889 = vadd.f32 %v821, %v857
      %v890 = vadd.f32 %v822, %v858
      %v891 = vadd.f32 %v823, %v859
      %v892 = vadd.f32 %v824, %v860
      %v893 = vadd.f32 %v825, %v861
      %v894 = vadd.f32 %v826, %v862
      %v895 = vadd.f32 %v827, %v863
      %v896 = vadd.f32 %v828, %v864
      %v897 = vadd.f32 %v829, %v865
      %v898 = vadd.f32 %v830, %v866
      %v899 = vadd.f32 %v831, %v867
      %v900 = vadd.f32 %v832, %v868
      %v901 = vadd.f32 %v833, %v869
      %v902 = vadd.f32 %v834, %v870
      %v903 = vadd.f32 %v835, %v871
      %v904 = vadd.f32 %v836, %v872
      %v905 = vlaneseq
      %v906 = vshrl.u32 %v905, 7
      %v907 = vsub.s32 6, %v906
      %v908 = vrot.slane %v269, %v907
      %v909 = vmul.f32 %v354, %v908
      %v910 = vmul.f32 %v355, %v908
      %v911 = vmul.f32 %v356, %v908
      %v912 = vmul.f32 %v357, %v908
      %v913 = vmul.f32 %v358, %v908
      %v914 = vmul.f32 %v359, %v908
      %v915 = vmul.f32 %v360, %v908
      %v916 = vmul.f32 %v361, %v908
      %v917 = vmul.f32 %v362, %v908
      %v918 = vmul.f32 %v363, %v908
      %v919 = vmul.f32 %v364, %v908
      %v920 = vmul.f32 %v365, %v908
      %v921 = vmul.f32 %v366, %v908
      %v922 = vmul.f32 %v367, %v908
      %v923 = vmul.f32 %v368, %v908
      %v924 = vmul.f32 %v369, %v908
      %v925 = vmul.f32 %v370, %v908
      %v926 = vmul.f32 %v371, %v908
      %v927 = vmul.f32 %v372, %v908
      %v928 = vmul.f32 %v373, %v908
      %v929 = vmul.f32 %v374, %v908
      %v930 = vmul.f32 %v375, %v908
      %v931 = vmul.f32 %v376, %v908
      %v932 = vmul.f32 %v377, %v908
      %v933 = vmul.f32 %v378, %v908
      %v934 = vmul.f32 %v379, %v908
      %v935 = vmul.f32 %v380, %v908
      %v936 = vmul.f32 %v381, %v908
      %v937 = vmul.f32 %v382, %v908
      %v938 = vmul.f32 %v383, %v908
      %v939 = vmul.f32 %v384, %v908
      %v940 = vmul.f32 %v385, %v908
      %v941 = vadd.f32 %v873, %v909
      %v942 = vadd.f32 %v874, %v910
      %v943 = vadd.f32 %v875, %v911
      %v944 = vadd.f32 %v876, %v912
      %v945 = vadd.f32 %v877, %v913
      %v946 = vadd.f32 %v878, %v914
      %v947 = vadd.f32 %v879, %v915
      %v948 = vadd.f32 %v880, %v916
      %v949 = vadd.f32 %v881, %v917
      %v950 = vadd.f32 %v882, %v918
      %v951 = vadd.f32 %v883, %v919
      %v952 = vadd.f32 %v884, %v920
      %v953 = vadd.f32 %v885, %v921
      %v954 = vadd.f32 %v886, %v922
      %v955 = vadd.f32 %v887, %v923
      %v956 = vadd.f32 %v888, %v924
      %v957 = vadd.f32 %v889, %v925
      %v958 = vadd.f32 %v890, %v926
      %v959 = vadd.f32 %v891, %v927
      %v960 = vadd.f32 %v892, %v928
      %v961 = vadd.f32 %v893, %v929
      %v962 = vadd.f32 %v894, %v930
      %v963 = vadd.f32 %v895, %v931
      %v964 = vadd.f32 %v896, %v932
      %v965 = vadd.f32 %v897, %v933
      %v966 = vadd.f32 %v898, %v934
      %v967 = vadd.f32 %v899, %v935
      %v968 = vadd.f32 %v900, %v936
      %v969 = vadd.f32 %v901, %v937
      %v970 = vadd.f32 %v902, %v938
      %v971 = vadd.f32 %v903, %v939
      %v972 = vadd.f32 %v904, %v940
      %v973 = vlaneseq
      %v974 = vshrl.u32 %v973, 7
      %v975 = vsub.s32 7, %v974
      %v976 = vrot.slane %v269, %v975
      %v977 = vmul.f32 %v237, %v976
      %v978 = vmul.f32 %v238, %v976
      %v979 = vmul.f32 %v239, %v976
      %v980 = vmul.f32 %v240, %v976
      %v981 = vmul.f32 %v241, %v976
      %v982 = vmul.f32 %v242, %v976
      %v983 = vmul.f32 %v243, %v976
      %v984 = vmul.f32 %v244, %v976
      %v985 = vmul.f32 %v245, %v976
      %v986 = vmul.f32 %v246, %v976
      %v987 = vmul.f32 %v247, %v976
      %v988 = vmul.f32 %v248, %v976
      %v989 = vmul.f32 %v249, %v976
      %v990 = vmul.f32 %v250, %v976
      %v991 = vmul.f32 %v251, %v976
      %v992 = vmul.f32 %v252, %v976
      %v993 = vmul.f32 %v253, %v976
      %v994 = vmul.f32 %v254, %v976
      %v995 = vmul.f32 %v255, %v976
      %v996 = vmul.f32 %v256, %v976
      %v997 = vmul.f32 %v257, %v976
      %v998 = vmul.f32 %v258, %v976
      %v999 = vmul.f32 %v259, %v976
      %v1000 = vmul.f32 %v260, %v976
      %v1001 = vmul.f32 %v261, %v976
      %v1002 = vmul.f32 %v262, %v976
      %v1003 = vmul.f32 %v263, %v976
      %v1004 = vmul.f32 %v264, %v976
      %v1005 = vmul.f32 %v265, %v976
      %v1006 = vmul.f32 %v266, %v976
      %v1007 = vmul.f32 %v267, %v976
      %v1008 = vmul.f32 %v268, %v976
      %v1009 = vadd.f32 %v941, %v977
      %v1010 = vadd.f32 %v942, %v978
      %v1011 = vadd.f32 %v943, %v979
      %v1012 = vadd.f32 %v944, %v980
      %v1013 = vadd.f32 %v945, %v981
      %v1014 = vadd.f32 %v946, %v982
      %v1015 = vadd.f32 %v947, %v983
      %v1016 = vadd.f32 %v948, %v984
      %v1017 = vadd.f32 %v949, %v985
      %v1018 = vadd.f32 %v950, %v986
      %v1019 = vadd.f32 %v951, %v987
      %v1020 = vadd.f32 %v952, %v988
      %v1021 = vadd.f32 %v953, %v989
      %v1022 = vadd.f32 %v954, %v990
      %v1023 = vadd.f32 %v955, %v991
      %v1024 = vadd.f32 %v956, %v992
      %v1025 = vadd.f32 %v957, %v993
      %v1026 = vadd.f32 %v958, %v994
      %v1027 = vadd.f32 %v959, %v995
      %v1028 = vadd.f32 %v960, %v996
      %v1029 = vadd.f32 %v961, %v997
      %v1030 = vadd.f32 %v962, %v998
      %v1031 = vadd.f32 %v963, %v999
      %v1032 = vadd.f32 %v964, %v1000
      %v1033 = vadd.f32 %v965, %v1001
      %v1034 = vadd.f32 %v966, %v1002
      %v1035 = vadd.f32 %v967, %v1003
      %v1036 = vadd.f32 %v968, %v1004
      %v1037 = vadd.f32 %v969, %v1005
      %v1038 = vadd.f32 %v970, %v1006
      %v1039 = vadd.f32 %v971, %v1007
      %v1040 = vadd.f32 %v972, %v1008
      %v1041 = vlaneseq
      %v1042 = vshrl.u32 %v1041, 7
      %v1043 = vsub.s32 0, %v1042
      %v1044 = vrot.slane %v270, %v1043
      %v1045 = vmul.f32 %v465, %v1044
      %v1046 = vmul.f32 %v466, %v1044
      %v1047 = vmul.f32 %v467, %v1044
      %v1048 = vmul.f32 %v468, %v1044
      %v1049 = vmul.f32 %v469, %v1044
      %v1050 = vmul.f32 %v470, %v1044
      %v1051 = vmul.f32 %v471, %v1044
      %v1052 = vmul.f32 %v472, %v1044
      %v1053 = vmul.f32 %v473, %v1044
      %v1054 = vmul.f32 %v474, %v1044
      %v1055 = vmul.f32 %v475, %v1044
      %v1056 = vmul.f32 %v476, %v1044
      %v1057 = vmul.f32 %v477, %v1044
      %v1058 = vmul.f32 %v478, %v1044
      %v1059 = vmul.f32 %v479, %v1044
      %v1060 = vmul.f32 %v480, %v1044
      %v1061 = vmul.f32 %v481, %v1044
      %v1062 = vmul.f32 %v482, %v1044
      %v1063 = vmul.f32 %v483, %v1044
      %v1064 = vmul.f32 %v484, %v1044
      %v1065 = vmul.f32 %v485, %v1044
      %v1066 = vmul.f32 %v486, %v1044
      %v1067 = vmul.f32 %v487, %v1044
      %v1068 = vmul.f32 %v488, %v1044
      %v1069 = vmul.f32 %v489, %v1044
      %v1070 = vmul.f32 %v490, %v1044
      %v1071 = vmul.f32 %v491, %v1044
      %v1072 = vmul.f32 %v492, %v1044
      %v1073 = vmul.f32 %v493, %v1044
      %v1074 = vmul.f32 %v494, %v1044
      %v1075 = vmul.f32 %v495, %v1044
      %v1076 = vmul.f32 %v496, %v1044
      %v1077 = vadd.f32 %v1009, %v1045
      %v1078 = vadd.f32 %v1010, %v1046
      %v1079 = vadd.f32 %v1011, %v1047
      %v1080 = vadd.f32 %v1012, %v1048
      %v1081 = vadd.f32 %v1013, %v1049
      %v1082 = vadd.f32 %v1014, %v1050
      %v1083 = vadd.f32 %v1015, %v1051
      %v1084 = vadd.f32 %v1016, %v1052
      %v1085 = vadd.f32 %v1017, %v1053
      %v1086 = vadd.f32 %v1018, %v1054
      %v1087 = vadd.f32 %v1019, %v1055
      %v1088 = vadd.f32 %v1020, %v1056
      %v1089 = vadd.f32 %v1021, %v1057
      %v1090 = vadd.f32 %v1022, %v1058
      %v1091 = vadd.f32 %v1023, %v1059
      %v1092 = vadd.f32 %v1024, %v1060
      %v1093 = vadd.f32 %v1025, %v1061
      %v1094 = vadd.f32 %v1026, %v1062
      %v1095 = vadd.f32 %v1027, %v1063
      %v1096 = vadd.f32 %v1028, %v1064
      %v1097 = vadd.f32 %v1029, %v1065
      %v1098 = vadd.f32 %v1030, %v1066
      %v1099 = vadd.f32 %v1031, %v1067
      %v1100 = vadd.f32 %v1032, %v1068
      %v1101 = vadd.f32 %v1033, %v1069
      %v1102 = vadd.f32 %v1034, %v1070
      %v1103 = vadd.f32 %v1035, %v1071
      %v1104 = vadd.f32 %v1036, %v1072
      %v1105 = vadd.f32 %v1037, %v1073
      %v1106 = vadd.f32 %v1038, %v1074
      %v1107 = vadd.f32 %v1039, %v1075
      %v1108 = vadd.f32 %v1040, %v1076
      %v1110 = vlaneseq
      %v1111 = vshrl.u32 %v1110, 7
      %v1112 = vsub.s32 0, %v1111
      %v1113 = vrot.slane %v271, %v1112
      %v1115 = vadd.f32 %v1077, %v1113
      %v1116 = vadd.f32 %v1078, %v1113
      %v1117 = vadd.f32 %v1079, %v1113
      %v1118 = vadd.f32 %v1080, %v1113
      %v1119 = vadd.f32 %v1081, %v1113
      %v1120 = vadd.f32 %v1082, %v1113
      %v1121 = vadd.f32 %v1083, %v1113
      %v1122 = vadd.f32 %v1084, %v1113
      %v1123 = vadd.f32 %v1085, %v1113
      %v1124 = vadd.f32 %v1086, %v1113
      %v1125 = vadd.f32 %v1087, %v1113
      %v1126 = vadd.f32 %v1088, %v1113
      %v1127 = vadd.f32 %v1089, %v1113
      %v1128 = vadd.f32 %v1090, %v1113
      %v1129 = vadd.f32 %v1091, %v1113
      %v1130 = vadd.f32 %v1092, %v1113
      %v1131 = vadd.f32 %v1093, %v1113
      %v1132 = vadd.f32 %v1094, %v1113
      %v1133 = vadd.f32 %v1095, %v1113
      %v1134 = vadd.f32 %v1096, %v1113
      %v1135 = vadd.f32 %v1097, %v1113
      %v1136 = vadd.f32 %v1098, %v1113
      %v1137 = vadd.f32 %v1099, %v1113
      %v1138 = vadd.f32 %v1100, %v1113
      %v1139 = vadd.f32 %v1101, %v1113
      %v1140 = vadd.f32 %v1102, %v1113
      %v1141 = vadd.f32 %v1103, %v1113
      %v1142 = vadd.f32 %v1104, %v1113
      %v1143 = vadd.f32 %v1105, %v1113
      %v1144 = vadd.f32 %v1106, %v1113
      %v1145 = vadd.f32 %v1107, %v1113
      %v1146 = vadd.f32 %v1108, %v1113
      %vm1147 = vcmask 261120
      %1148 = vst.msk [vmem:[%s232] sm:$0xff] %vm1147, %v1115
      %1149 = vst.msk [vmem:[%s232 + $0x8] sm:$0xff] %vm1147, %v1116
      %1150 = vst.msk [vmem:[%s232 + $0x10] sm:$0xff] %vm1147, %v1117
      %1151 = vst.msk [vmem:[%s232 + $0x18] sm:$0xff] %vm1147, %v1118
      %1152 = vst.msk [vmem:[%s232 + $0x20] sm:$0xff] %vm1147, %v1119
      %1153 = vst.msk [vmem:[%s232 + $0x28] sm:$0xff] %vm1147, %v1120
      %1154 = vst.msk [vmem:[%s232 + $0x30] sm:$0xff] %vm1147, %v1121
      %1155 = vst.msk [vmem:[%s232 + $0x38] sm:$0xff] %vm1147, %v1122
      %1156 = vst.msk [vmem:[%s232 + $0x40] sm:$0xff] %vm1147, %v1123
      %1157 = vst.msk [vmem:[%s232 + $0x48] sm:$0xff] %vm1147, %v1124
      %1158 = vst.msk [vmem:[%s232 + $0x50] sm:$0xff] %vm1147, %v1125
      %1159 = vst.msk [vmem:[%s232 + $0x58] sm:$0xff] %vm1147, %v1126
      %1160 = vst.msk [vmem:[%s232 + $0x60] sm:$0xff] %vm1147, %v1127
      %1161 = vst.msk [vmem:[%s232 + $0x68] sm:$0xff] %vm1147, %v1128
      %1162 = vst.msk [vmem:[%s232 + $0x70] sm:$0xff] %vm1147, %v1129
      %1163 = vst.msk [vmem:[%s232 + $0x78] sm:$0xff] %vm1147, %v1130
      %1164 = vst.msk [vmem:[%s232 + $0x80] sm:$0xff] %vm1147, %v1131
      %1165 = vst.msk [vmem:[%s232 + $0x88] sm:$0xff] %vm1147, %v1132
      %1166 = vst.msk [vmem:[%s232 + $0x90] sm:$0xff] %vm1147, %v1133
      %1167 = vst.msk [vmem:[%s232 + $0x98] sm:$0xff] %vm1147, %v1134
      %1168 = vst.msk [vmem:[%s232 + $0xa0] sm:$0xff] %vm1147, %v1135
      %1169 = vst.msk [vmem:[%s232 + $0xa8] sm:$0xff] %vm1147, %v1136
      %1170 = vst.msk [vmem:[%s232 + $0xb0] sm:$0xff] %vm1147, %v1137
      %1171 = vst.msk [vmem:[%s232 + $0xb8] sm:$0xff] %vm1147, %v1138
      %1172 = vst.msk [vmem:[%s232 + $0xc0] sm:$0xff] %vm1147, %v1139
      %1173 = vst.msk [vmem:[%s232 + $0xc8] sm:$0xff] %vm1147, %v1140
      %1174 = vst.msk [vmem:[%s232 + $0xd0] sm:$0xff] %vm1147, %v1141
      %1175 = vst.msk [vmem:[%s232 + $0xd8] sm:$0xff] %vm1147, %v1142
      %1176 = vst.msk [vmem:[%s232 + $0xe0] sm:$0xff] %vm1147, %v1143
      %1177 = vst.msk [vmem:[%s232 + $0xe8] sm:$0xff] %vm1147, %v1144
      %1178 = vst.msk [vmem:[%s232 + $0xf0] sm:$0xff] %vm1147, %v1145
      %1179 = vst.msk [vmem:[%s232 + $0xf8] sm:$0xff] %vm1147, %v1146
      %p1180 = scmp.lt.s32.totalorder %s18, 1
      %s1181 = scalar_select %p1180, %s18, 1
      %p1182 = scmp.lt.s32.totalorder %s19, 0
      %s1183 = scalar_select %p1182, %s19, 0
      %s1184 = smul.addr %s1181, 32
      %s1185 = sadd.s32 %s1183, %s1184
      %s1186 = smul.addr %s1185, 8
      %s1187 = scalar_lea.vmem %s3, %s1186
      // Predicated region
      $region33: #{depthwise_conv_forward.1} parent=31 // pred_check
        %p1188 = pneg %p126
      $region34: #{depthwise_conv_forward.1} parent=31 // pred_check_branch
        %1190 = sbr.rel (%p1188) target = $region36
      $region35: #{depthwise_conv_forward.1} parent=31 // pred_region
        _
      $region36: #{depthwise_conv_forward.1} parent=31 // pred_fallthru
        _
    $region32: #{depthwise_conv_forward.1} parent=5 // pred_fallthru
      _
    %p1191 = scmp.le.s32.totalorder 2, %s9
    // Predicated region
    $region37: #{depthwise_conv_forward.1} parent=5 // pred_check
      %p1192 = pneg %p1191
    $region38: #{depthwise_conv_forward.1} parent=5 // pred_check_branch
      %1194 = sbr.rel (%p1192) target = $region40
    $region39: #{depthwise_conv_forward.1} parent=5 // pred_region
      %s1195 = ssub.s32 %s9, 2
      // Predicated region
      $region41: #{depthwise_conv_forward.1} parent=39 // pred_check
        %p1196 = pneg %p132
      $region42: #{depthwise_conv_forward.1} parent=39 // pred_check_branch
        %1198 = sbr.rel (%p1196) target = $region44
      $region43: #{depthwise_conv_forward.1} parent=39 // pred_region
        %p1199 = scmp.lt.s32.totalorder %s20, 1
        %s1200 = scalar_select %p1199, %s20, 1
        %p1201 = scmp.lt.s32.totalorder %s21, 0
        %s1202 = scalar_select %p1201, %s21, 0
        %s1203 = smul.addr %s1200, 32
        %s1204 = sadd.s32 %s1202, %s1203
        %s1205 = smul.addr %s1204, 8
        %s1206 = scalar_lea.vmem %s3, %s1205
      $region44: #{depthwise_conv_forward.1} parent=39 // pred_fallthru
        _
    $region40: #{depthwise_conv_forward.1} parent=5 // pred_fallthru
      _
  $region6: #{depthwise_conv_forward.1} parent=0 // loop_footer
    %s13 = sadd.s32 1, %s9
  $region7: #{depthwise_conv_forward.1} parent=0 // loop_footer_branch
    %8 = sbr.rel target = $region3
  $region8: #{depthwise_conv_forward.1} parent=0 // loop_exit
    _

</llo_original>
